<compile_context>
chip_gen: v6e
topology: v6e:2x2x1
jax: 0.10.0
libtpu: 0.0.40
codegen_flags: <defaults>
</compile_context>

<pallas_src>
import jax
import jax.numpy as jnp
from jax.experimental import pallas as pl
from jax.experimental.pallas import tpu as pltpu


SAMPLES_PER_ROW = 64                 # 64 samples * 2 features = 128 lanes/row
ROW_ALIGN = 8 * SAMPLES_PER_ROW      # 512 samples -> row count multiple of 8
TILE_ROWS = 8192                     # 512K samples / step: ~4 MiB in, ~1 MiB out


def _logistic_kernel(b_ref, x_ref, m_ref, o_ref):
    # b_ref: SMEM (1,)                 bias (scalar read)
    # x_ref: VMEM (TILE_ROWS, 128)     interleaved [f0, f1, f0, f1, ...] lanes
    # m_ref: VMEM (128, 64)            de-interleave + weight matrix
    # o_ref: VMEM (TILE_ROWS, 64)      one sigmoid per sample, dense rows
    #
    # z[r, k] = w0 * x[r, 2k] + w1 * x[r, 2k+1]  — one MXU matmul does both
    # the even/odd-lane de-interleave and the weighted sum (MXU is otherwise
    # idle; this avoids any XLU relayout / strided lane access).
    z = jnp.dot(x_ref[...], m_ref[...], preferred_element_type=jnp.float32)
    z = z + b_ref[0]
    # Exact sigmoid on the EUP (single tanh), no approximate reciprocal.
    o_ref[...] = (0.5 * jnp.tanh(0.5 * z) + 0.5).astype(o_ref.dtype)


def logistic_regression(x, weight, bias, *, tile_rows=TILE_ROWS):
    """x: [N, 2] f32, weight: [1, 2] f32, bias: [1] f32 -> [N, 1] f32."""
    n, in_f = x.shape
    assert in_f == 2 and weight.shape == (1, 2) and bias.shape == (1,)
    x = x.astype(jnp.float32)

    # Align the batch so the flat feature stream reshapes to (rows, 128) with
    # rows a multiple of 8.  For aligned N (the common large-batch case) this
    # is a no-op and the reshape below is a zero-copy bitcast; otherwise it is
    # one small pad copy (unavoidable to form full 128-lane rows).
    n_pad = ((n + ROW_ALIGN - 1) // ROW_ALIGN) * ROW_ALIGN
    if n_pad != n:
        x = jnp.pad(x, ((0, n_pad - n), (0, 0)))
    rows = n_pad // SAMPLES_PER_ROW
    x2d = x.reshape(rows, 2 * SAMPLES_PER_ROW)          # (rows, 128), zero-copy

    # Projection matrix M (128, 64): column k has w0 at row 2k, w1 at row 2k+1.
    w = weight.reshape(2).astype(jnp.float32)
    eye = jnp.eye(SAMPLES_PER_ROW, dtype=jnp.float32)   # (64, 64)
    m = jnp.stack([w[0] * eye, w[1] * eye], axis=1).reshape(
        2 * SAMPLES_PER_ROW, SAMPLES_PER_ROW)           # (128, 64)

    b = bias.reshape(1).astype(jnp.float32)

    tr = min(tile_rows, rows)                           # full array if small
    grid = (pl.cdiv(rows, tr),)

    out = pl.pallas_call(
        _logistic_kernel,
        out_shape=jax.ShapeDtypeStruct((rows, SAMPLES_PER_ROW), jnp.float32),
        grid=grid,
        in_specs=[
            # Bias as a scalar in SMEM (no padded VMEM tile).
            pl.BlockSpec(memory_space=pltpu.MemorySpace.SMEM),
            # x: sublane+lane dense (tr, 128) row tiles, streamed over the grid.
            pl.BlockSpec((tr, 2 * SAMPLES_PER_ROW), lambda i: (i, 0)),
            # Projection matrix: constant block, fetched once.
            pl.BlockSpec((2 * SAMPLES_PER_ROW, SAMPLES_PER_ROW), lambda i: (0, 0)),
        ],
        out_specs=pl.BlockSpec((tr, SAMPLES_PER_ROW), lambda i: (i, 0)),
        compiler_params=pltpu.CompilerParams(
            dimension_semantics=("parallel",),          # shard rows on v7x cores
            vmem_limit_bytes=32 * 1024 * 1024,          # fits v7x 64 MiB/TC budget
        ),
    )(b, x2d, m)

    # Flat order of `out` is exactly sample order: reshape is free; the [:n]
    # slice only materializes a copy when padding was added above.
    return out.reshape(-1)[:n].reshape(n, 1)


if __name__ == "__main__":
    key = jax.random.PRNGKey(0)
    k_x, k_w, k_b = jax.random.split(key, 3)

    # Small deterministic example: batch of 8 samples, 2 features each.
    N, IN_F, OUT_F = 8, 2, 1
    x = jax.random.normal(k_x, (N, IN_F), dtype=jnp.float32)

    # Deterministic parameter init mimicking nn.Linear's default:
    # U(-1/sqrt(in_features), 1/sqrt(in_features)).
    bound = 1.0 / jnp.sqrt(jnp.float32(IN_F))
    weight = jax.random.uniform(k_w, (OUT_F, IN_F), jnp.float32, -bound, bound)
    bias = jax.random.uniform(k_b, (OUT_F,), jnp.float32, -bound, bound)

    out = logistic_regression(x, weight, bias)
    out = jax.block_until_ready(out)

    # Cross-check against plain-JAX reference.  Expected error is ~1e-6
    # (exact tanh-sigmoid, f32 accumulation); tolerance left loose to cover
    # any reduced-precision MXU pass on a given generation.
    ref = jax.nn.sigmoid(x @ weight.T + bias)
    assert out.shape == (N, OUT_F)
    assert jnp.allclose(out, ref, atol=2e-3, rtol=2e-3)

    print("KERNEL_OK")
</pallas_src>

<mosaic_0001>
module attributes {stable_mosaic.version = 11 : i64} {
  func.func @_logistic_kernel(%arg0: i32, %arg1: memref<1xf32, #tpu.memory_space<smem>>, %arg2: memref<8x128xf32, #tpu.memory_space<vmem>>, %arg3: memref<128x64xf32, #tpu.memory_space<vmem>>, %arg4: memref<8x64xf32, #tpu.memory_space<vmem>>) attributes {dimension_semantics = [#tpu.dimension_semantics<parallel>], iteration_bounds = array<i64: 1>, scalar_prefetch = 0 : i64, scratch_operands = 0 : i64, tpu.core_type = #tpu.core_type<tc>, window_params = [{transform_indices = @transform_0, window_bounds = array<i64: 1>}, {transform_indices = @transform_1, window_bounds = array<i64: 8, 128>}, {pipeline_mode = #tpu.pipeline_mode<synchronous>, transform_indices = @transform_2, window_bounds = array<i64: 128, 64>}, {transform_indices = @transform_3, window_bounds = array<i64: 8, 64>}]} {
    %c0 = arith.constant 0 : index
    %c0_0 = arith.constant 0 : index
    %0 = vector.load %arg2[%c0, %c0_0] : memref<8x128xf32, #tpu.memory_space<vmem>>, vector<8x128xf32>
    %c0_1 = arith.constant 0 : index
    %c0_2 = arith.constant 0 : index
    %1 = vector.load %arg3[%c0_1, %c0_2] : memref<128x64xf32, #tpu.memory_space<vmem>>, vector<128x64xf32>
    %cst = arith.constant dense<0.000000e+00> : vector<8x64xf32>
    %2 = tpu.matmul %0, %1, %cst {dimension_numbers = #tpu.dot_dimension_numbers<[1], [0], [0], [1], [0, 0, 1, 1], [], []>} : vector<8x128xf32>, vector<128x64xf32>, vector<8x64xf32> -> vector<8x64xf32>
    %c0_3 = arith.constant 0 : index
    %3 = memref.load %arg1[%c0_3] : memref<1xf32, #tpu.memory_space<smem>>
    %4 = vector.broadcast %3 : f32 to vector<8x64xf32>
    %5 = arith.addf %2, %4 : vector<8x64xf32>
    %cst_4 = arith.constant 5.000000e-01 : f32
    %6 = vector.broadcast %cst_4 : f32 to vector<8x64xf32>
    %7 = arith.mulf %6, %5 : vector<8x64xf32>
    %8 = math.tanh %7 : vector<8x64xf32>
    %cst_5 = arith.constant 5.000000e-01 : f32
    %9 = vector.broadcast %cst_5 : f32 to vector<8x64xf32>
    %10 = arith.mulf %9, %8 : vector<8x64xf32>
    %cst_6 = arith.constant 5.000000e-01 : f32
    %11 = vector.broadcast %cst_6 : f32 to vector<8x64xf32>
    %12 = arith.addf %10, %11 : vector<8x64xf32>
    %c0_7 = arith.constant 0 : index
    %c0_8 = arith.constant 0 : index
    %13 = vector.load %arg4[%c0_7, %c0_8] : memref<8x64xf32, #tpu.memory_space<vmem>>, vector<8x64xf32>
    tpu.vector_store %arg4[%c0_7, %c0_8], %12 {strides = array<i32>} : memref<8x64xf32, #tpu.memory_space<vmem>>, vector<8x64xf32>,
    return
  }
  func.func @transform_0(%arg0: i32) -> i32 {
    %c0_i32 = arith.constant 0 : i32
    %c0_i32_0 = arith.constant 0 : i32
    return %c0_i32 : i32
  }
  func.func @transform_1(%arg0: i32) -> (i32, i32) {
    %c0_i32 = arith.constant 0 : i32
    %c0_i32_0 = arith.constant 0 : i32
    return %arg0, %c0_i32 : i32, i32
  }
  func.func @transform_2(%arg0: i32) -> (i32, i32) {
    %c0_i32 = arith.constant 0 : i32
    %c0_i32_0 = arith.constant 0 : i32
    %c0_i32_1 = arith.constant 0 : i32
    return %c0_i32, %c0_i32_0 : i32, i32
  }
  func.func @transform_3(%arg0: i32) -> (i32, i32) {
    %c0_i32 = arith.constant 0 : i32
    %c0_i32_0 = arith.constant 0 : i32
    return %arg0, %c0_i32 : i32, i32
  }
}

</mosaic_0001>

<llo_original>
// kernel: tpu_custom_call.1
$region0: #{tpu_custom_call.1}
  #allocation0 [shape = 'u32[]', space=smem, size = 0x4, offset = 0x4, fixed_abs, tag = 'smem constant byte address 0x4 - core index']
  #allocation1 [shape = 'u32[144,128]{1,0:T(1,128)}', space=vmem, size = 0x12000, scoped, tag = 'internal scratch']
  #allocation2 [shape = 'f32[1]{0:T(128)S(6)}', space=smem, size = 0x200, scoped, tag = 'scoped memory for tpu_custom_call.1']
  %s0 = inlined_call_operand.<no memory space> [shape: f32[1], index: 0, kind: input, shape index: {}]
  %s1 = inlined_call_operand.vmem [shape: f32[8,128], index: 1, kind: input, shape index: {}]
  %s2 = inlined_call_operand.vmem [shape: f32[128,64], index: 2, kind: input, shape index: {}]
  %s3 = inlined_call_operand.hbm [shape: f32[8,64], index: 3, kind: output, shape index: {}]
  %s4 = sld [smem:[#allocation0]]
  $region22: #{tpu_custom_call.1} parent=0
    _
  %s6 = ssub.s32 1, %s4
  %s7 = scalar_select 0, %s6, %s4
  %8 = sst [smem:[#allocation2]] %s0
  $region1: #{tpu_custom_call.1} parent=0
    #allocation3 [shape = 'u8[4096]{0}', space=vmem, size = 0x1000, scoped, tag = 'output window, operand 0, single buffered']
    #allocation4 [shape = 's32[1]{0}', space=sflag, size = 0x4, scoped, tag = 'scoped memory for tpu_custom_call.1']
    %9 = vsyncpa [#allocation4], 0
    // Predicated region
    $region2: #{tpu_custom_call.1} parent=1 // pred_check
      _
    $region3: #{tpu_custom_call.1} parent=1 // pred_check_branch
      %11 = sbr.rel (0) target = $region5
    $region4: #{tpu_custom_call.1} parent=1 // pred_region
      _
    $region5: #{tpu_custom_call.1} parent=1 // pred_fallthru
      _
    // Predicated region
    $region6: #{tpu_custom_call.1} parent=1 // pred_check
      _
    $region7: #{tpu_custom_call.1} parent=1 // pred_check_branch
      %13 = sbr.rel (0) target = $region9
    $region8: #{tpu_custom_call.1} parent=1 // pred_region
      _
    $region9: #{tpu_custom_call.1} parent=1 // pred_fallthru
      _
    // Predicated region
    $region10: #{tpu_custom_call.1} parent=1 // pred_check
      _
    $region11: #{tpu_custom_call.1} parent=1 // pred_check_branch
      %15 = sbr.rel (0) target = $region13
    $region12: #{tpu_custom_call.1} parent=1 // pred_region
      _
    $region13: #{tpu_custom_call.1} parent=1 // pred_fallthru
      _
    %v16 = vld [vmem:[%s1] sm:$0xff]
    %v17 = vld [vmem:[%s2] sm:$0xff]
    %v18 = vld [vmem:[%s2 + $0x8] sm:$0xff]
    %v19 = vld [vmem:[%s2 + $0x10] sm:$0xff]
    %v20 = vld [vmem:[%s2 + $0x18] sm:$0xff]
    %v21 = vld [vmem:[%s2 + $0x20] sm:$0xff]
    %v22 = vld [vmem:[%s2 + $0x28] sm:$0xff]
    %v23 = vld [vmem:[%s2 + $0x30] sm:$0xff]
    %v24 = vld [vmem:[%s2 + $0x38] sm:$0xff]
    %v25 = vld [vmem:[%s2 + $0x40] sm:$0xff]
    %v26 = vld [vmem:[%s2 + $0x48] sm:$0xff]
    %v27 = vld [vmem:[%s2 + $0x50] sm:$0xff]
    %v28 = vld [vmem:[%s2 + $0x58] sm:$0xff]
    %v29 = vld [vmem:[%s2 + $0x60] sm:$0xff]
    %v30 = vld [vmem:[%s2 + $0x68] sm:$0xff]
    %v31 = vld [vmem:[%s2 + $0x70] sm:$0xff]
    %v32 = vld [vmem:[%s2 + $0x78] sm:$0xff]
    %s33 = sld [smem:[#allocation2]]
    %v34 = vstv %s33
    %35 = vmatprep.subr.mxu0 0.0
    %36 = vmatpush1.msra.mxu0 %v32
    %37 = vmatprep.subr.mxu0 0.0
    %38 = vmatpush1.msra.mxu0 %v31
    %39 = vmatprep.subr.mxu0 0.0
    %40 = vmatpush1.msra.mxu0 %v30
    %41 = vmatprep.subr.mxu0 0.0
    %42 = vmatpush1.msra.mxu0 %v29
    %43 = vmatprep.subr.mxu0 0.0
    %44 = vmatpush1.msra.mxu0 %v28
    %45 = vmatprep.subr.mxu0 0.0
    %46 = vmatpush1.msra.mxu0 %v27
    %47 = vmatprep.subr.mxu0 0.0
    %48 = vmatpush1.msra.mxu0 %v26
    %49 = vmatprep.subr.mxu0 0.0
    %50 = vmatpush1.msra.mxu0 %v25
    %51 = vmatprep.subr.mxu0 0.0
    %52 = vmatpush1.msra.mxu0 %v24
    %53 = vmatprep.subr.mxu0 0.0
    %54 = vmatpush1.msra.mxu0 %v23
    %55 = vmatprep.subr.mxu0 0.0
    %56 = vmatpush1.msra.mxu0 %v22
    %57 = vmatprep.subr.mxu0 0.0
    %58 = vmatpush1.msra.mxu0 %v21
    %59 = vmatprep.subr.mxu0 0.0
    %60 = vmatpush1.msra.mxu0 %v20
    %61 = vmatprep.subr.mxu0 0.0
    %62 = vmatpush1.msra.mxu0 %v19
    %63 = vmatprep.subr.mxu0 0.0
    %64 = vmatpush1.msra.mxu0 %v18
    %65 = vmatprep.subr.mxu0 0.0
    %66 = vmatpush1.msra.mxu0 %v17
    %67 = vmatprep.subr.mxu0 0.0
    %68 = vmatpush2.msra.mxu0 0.0
    %69 = vmatprep.subr.mxu0 0.0
    %70 = vmatpush2.msra.mxu0 0.0
    %71 = vmatprep.subr.mxu0 0.0
    %72 = vmatpush2.msra.mxu0 0.0
    %73 = vmatprep.subr.mxu0 0.0
    %74 = vmatpush2.msra.mxu0 0.0
    %75 = vmatprep.subr.mxu0 0.0
    %76 = vmatpush2.msra.mxu0 0.0
    %77 = vmatprep.subr.mxu0 0.0
    %78 = vmatpush2.msra.mxu0 0.0
    %79 = vmatprep.subr.mxu0 0.0
    %80 = vmatpush2.msra.mxu0 0.0
    %81 = vmatprep.subr.mxu0 0.0
    %82 = vmatpush2.msra.mxu0 0.0
    %83 = vmatprep.subr.mxu0 0.0
    %84 = vmatpush2.msra.mxu0 0.0
    %85 = vmatprep.subr.mxu0 0.0
    %86 = vmatpush2.msra.mxu0 0.0
    %87 = vmatprep.subr.mxu0 0.0
    %88 = vmatpush2.msra.mxu0 0.0
    %89 = vmatprep.subr.mxu0 0.0
    %90 = vmatpush2.msra.mxu0 0.0
    %91 = vmatprep.subr.mxu0 0.0
    %92 = vmatpush2.msra.mxu0 0.0
    %93 = vmatprep.subr.mxu0 0.0
    %94 = vmatpush2.msra.mxu0 0.0
    %95 = vmatprep.subr.mxu0 0.0
    %96 = vmatpush2.msra.mxu0 0.0
    %97 = vmatprep.subr.mxu0 0.0
    %98 = vmatpush2.msra.mxu0 0.0
    %99 = vmatprep.mubr.f32.mxu0 0.0
    %100 = vmatmul.mubr.f32.gmra.mxu0 %v16
    %v101 = vpop.f32.mrf.mxu0
    %v102 = vadd.f32 %v34, %v101
    %v103 = vpop.f32.mrf.mxu0
    %104 = vdwg.mxu0
    %v105 = vmul.f32 %v102, 0.5
    %v106 = vtanh.pop %v105
    %v107 = vmul.f32 %v106, 0.5
    %v108 = vadd.f32 %v107, 0.5
    %vm109 = vcmask 523264
    %110 = vst.msk [vmem:[#allocation3] sm:$0xff] %vm109, %v108
    // Predicated region
    $region14: #{tpu_custom_call.1} parent=1 // pred_check
      _
    $region15: #{tpu_custom_call.1} parent=1 // pred_check_branch
      %112 = sbr.rel (0) target = $region17
    $region16: #{tpu_custom_call.1} parent=1 // pred_region
      %s114 = ssub.s32 128, 128
      %115 = vsyncadd [#allocation4], %s114
      %s117 = sshll.u32 [#allocation3], 4
      %s118 = int_to_ptr.vmem [resolvable:$true] %s117
      %120 = dma.vmem_to_hbm [thread:$0]  %s118, 128, %s3, [#allocation4]
    $region17: #{tpu_custom_call.1} parent=1 // pred_fallthru
      _
    // Predicated region
    $region18: #{tpu_custom_call.1} parent=1 // pred_check
      _
    $region19: #{tpu_custom_call.1} parent=1 // pred_check_branch
      %122 = sbr.rel (0) target = $region21
    $region20: #{tpu_custom_call.1} parent=1 // pred_region
      %123 = dma.done [#allocation4], 128
    $region21: #{tpu_custom_call.1} parent=1 // pred_fallthru
      _
    %124 = vsyncpa [#allocation4], 1

</llo_original>
